<compile_context>
chip_gen: v7x
topology: tpu7x:2x2x1
jax: 0.10.0
libtpu: 0.0.40
codegen_flags: <defaults>
</compile_context>

<pallas_src>
import functools
import inspect

import jax
import jax.numpy as jnp
import numpy as np
from jax.experimental import pallas as pl
from jax.experimental.pallas import tpu as pltpu


# "minus infinity" sentinel; safe as long as real logits stay far below 1e30 (they do).
# m_sc is seeded with the same value so the first online-logsumexp step is well defined.
_NEG_LARGE = -1e30


def _round_up(x, m):
    return ((x + m - 1) // m) * m


def _cdiv(a, b):
    return -(-a // b)


def _supports_pipeline_mode():
    if not hasattr(pl, "Buffered"):
        return False
    try:
        return "pipeline_mode" in inspect.signature(pl.BlockSpec).parameters
    except (TypeError, ValueError):
        return False


_HAS_PIPELINE_MODE = _supports_pipeline_mode()


def _spec(shape, index_map, buffers=None):
    """BlockSpec helper: attach an explicit buffer count when Pallas supports it."""
    if buffers is not None and _HAS_PIPELINE_MODE:
        return pl.BlockSpec(shape, index_map, pipeline_mode=pl.Buffered(buffers))
    return pl.BlockSpec(shape, index_map)


# ---------------------------------------------------------------------------
# Pallas kernel: fused tanh(dense(x)) -> tied lm_head -> online-CE reduction
# ---------------------------------------------------------------------------

def _fused_head_ce_kernel(x_ref, wd_ref, bd_ref, we_ref, lab_ref, act_ref,
                          out_ref, h_sc, m_sc, l_sc, p_sc,
                          *, v_total, v_padded):
    v = pl.program_id(1)
    nv = pl.num_programs(1)
    tv = we_ref.shape[0]

    # ---- per-M-tile init: dense -> tanh (stays resident in VMEM) + running stats ----
    @pl.when(v == 0)
    def _init():
        x = x_ref[...]                                         # (tm, H) bf16
        wd = wd_ref[...]                                       # (H, H)  bf16
        y = jax.lax.dot_general(x, wd, (((1,), (1,)), ((), ())),
                                preferred_element_type=jnp.float32)
        y = jnp.tanh(y + bd_ref[...])                          # f32
        h_sc[...] = y.astype(jnp.bfloat16)
        m_sc[...] = jnp.full(m_sc.shape, _NEG_LARGE, jnp.float32)
        l_sc[...] = jnp.zeros(l_sc.shape, jnp.float32)
        p_sc[...] = jnp.zeros(p_sc.shape, jnp.float32)

    # ---- stream one We tile: logits + online logsumexp + picked (label) logit ----
    logits = jax.lax.dot_general(h_sc[...], we_ref[...],
                                 (((1,), (1,)), ((), ())),
                                 preferred_element_type=jnp.float32)  # (tm, tv)

    # Tile-local column index; compare against shifted scalars so no per-step full-tile
    # "+ v*tv" integer add is needed (perf review).
    col = jax.lax.broadcasted_iota(jnp.int32, logits.shape, 1)
    v_off = v * tv
    if v_padded != v_total:          # static: only emit the pad-column mask when padding exists
        logits = jnp.where(col < (v_total - v_off), logits, _NEG_LARGE)

    labels = lab_ref[...]                                      # (tm, 1) int32
    p_sc[...] += jnp.sum(jnp.where(col == (labels - v_off), logits, 0.0),
                         axis=-1, keepdims=True)

    m_prev = m_sc[...]
    m_new = jnp.maximum(m_prev, jnp.max(logits, axis=-1, keepdims=True))
    alpha = jnp.exp(m_prev - m_new)
    l_sc[...] = alpha * l_sc[...] + jnp.sum(jnp.exp(logits - m_new),
                                            axis=-1, keepdims=True)
    m_sc[...] = m_new

    # ---- finalize: per-M-tile partial sums, written once (out index depends on i only) ----
    @pl.when(v == nv - 1)
    def _fin():
        lse = m_sc[...] + jnp.log(l_sc[...])                   # (tm, 1)
        nll = lse - p_sc[...]                                  # -log_softmax[label]
        active = act_ref[...] != 0                             # target_mask[..., 1:] != 0
        valid = jnp.logical_and(active, lab_ref[...] != -1)    # ignore_index=-1 + pad rows
        nll_sum = jnp.sum(jnp.where(valid, nll, 0.0))
        valid_cnt = jnp.sum(valid.astype(jnp.float32))
        active_cnt = jnp.sum(active.astype(jnp.float32))
        lane = jax.lax.broadcasted_iota(jnp.int32, out_ref.shape, 2)
        out_ref[...] = jnp.where(
            lane == 0, nll_sum,
            jnp.where(lane == 1, valid_cnt,
                      jnp.where(lane == 2, active_cnt, 0.0)))


def _head_tile_config(N, H, V):
    """Per-TPU-generation (tm, tv, vmem_limit_bytes) for the fused head kernel.

    Arithmetic intensity w.r.t. the streamed We bytes is ~tm flops/byte, so tm is sized to
    approach the per-generation roofline while respecting that generation's VMEM:
      v6e : 128 MiB VMEM, ~680 flops/byte needed  -> tm=512, tv=2048, 64 MiB limit
      v5e : 128 MiB VMEM, ~240 flops/byte needed  -> tm=256, tv=2048, 64 MiB limit
      v7x :  64 MiB VMEM, 2 TensorCores           -> tm=256, tv=2048, 48 MiB limit
    """
    try:
        kind = jax.devices()[0].device_kind.lower()
    except Exception:  # pragma: no cover - defensive
        kind = ""
    if "v6" in kind:
        tm, tv, vmem_limit = 512, 2048, 64 * 1024 * 1024
    elif "v5" in kind:
        tm, tv, vmem_limit = 256, 2048, 64 * 1024 * 1024
    elif "v7" in kind:
        tm, tv, vmem_limit = 256, 2048, 48 * 1024 * 1024
    else:
        tm, tv, vmem_limit = 256, 1024, 32 * 1024 * 1024       # conservative fallback

    n_pad8 = _round_up(max(N, 8), 8)
    v_pad128 = _round_up(max(V, 128), 128)
    tm = min(tm, n_pad8)
    tv = min(tv, v_pad128)
    # v7x has 2 TensorCores: make sure the "parallel" M axis has >= 2 tiles when N permits,
    # so the second core is not idle.  (Single-core parts keep num_m minimal: each extra
    # M tile re-streams We from HBM.)
    if "v7" in kind and _cdiv(n_pad8, tm) < 2 and n_pad8 >= 16:
        tm = _round_up(_cdiv(n_pad8, 2), 8)
    return tm, tv, vmem_limit


def prepare_tied_head_weight(we, multiple=2048):
    """One-time (outside jit) bf16 cast + vocab padding of the tied lm_head weight.

    Doing this per forward call would re-read the full (V, H) f32 embedding from HBM every
    step (perf review); store the result in the parameter tree instead.  `multiple` must be a
    multiple of every block_v you intend to use (2048 covers 128..2048).
    """
    V, H = we.shape
    v_pad = _round_up(V, multiple)
    we_b = we.astype(jnp.bfloat16)
    if v_pad != V:
        we_b = jnp.zeros((v_pad, H), jnp.bfloat16).at[:V].set(we_b)
    return we_b


def fused_head_ce(x, dense_w, dense_b, we, labels, active, *,
                  v_total=None, block_m=None, block_v=None, we_buffers=2):
    """Fused head: returns (nll_sum, valid_cnt, active_cnt) over the N rows of x.

    x: (N, H) decoder output rows (tokens-major), dense_w: (H, H) (bf16 preferred),
    dense_b: (H,), we: (V_pad, H) tied lm_head weight (bf16 pre-padded preferred),
    labels/active: (N,) int, v_total: true vocab size (<= we.shape[0]).
    """
    N, H = x.shape
    v_rows = we.shape[0]
    v_total = int(v_rows) if v_total is None else int(v_total)

    tm_auto, tv_auto, vmem_limit = _head_tile_config(N, H, v_total)
    tm = tm_auto if block_m is None else min(_round_up(block_m, 8), _round_up(N, 8))
    tv = tv_auto if block_v is None else min(_round_up(block_v, 128), _round_up(v_rows, 128))

    n_pad = _round_up(N, tm)
    v_pad = _round_up(v_rows, tv)
    num_m = n_pad // tm
    num_v = v_pad // tv

    # Row padding: zero activations, label=-1, active=0 (excluded by the in-kernel mask).
    x_p = jnp.zeros((n_pad, H), jnp.bfloat16).at[:N].set(x.astype(jnp.bfloat16))
    lab_p = jnp.full((n_pad, 1), -1, jnp.int32).at[:N, 0].set(labels.astype(jnp.int32))
    act_p = jnp.zeros((n_pad, 1), jnp.int32).at[:N, 0].set(active.astype(jnp.int32))

    # Weights: prefer pre-cast / pre-padded bf16 (prepare_tied_head_weight); the in-graph
    # cast/pad below is only a fallback for raw f32 / unpadded callers.
    we_p = we if we.dtype == jnp.bfloat16 else we.astype(jnp.bfloat16)
    if v_pad != v_rows:
        we_p = jnp.zeros((v_pad, H), jnp.bfloat16).at[:v_rows].set(we_p)
    wd_p = dense_w if dense_w.dtype == jnp.bfloat16 else dense_w.astype(jnp.bfloat16)
    bd_p = dense_b.reshape(1, H).astype(jnp.float32)

    kernel = functools.partial(_fused_head_ce_kernel, v_total=v_total, v_padded=v_pad)

    parts = pl.pallas_call(
        kernel,
        out_shape=jax.ShapeDtypeStruct((num_m, 8, 128), jnp.float32),
        grid_spec=pltpu.PrefetchScalarGridSpec(
            num_scalar_prefetch=0,
            grid=(num_m, num_v),
            in_specs=[
                # Resident-per-M-tile operands: single buffer (no dead double buffers).
                _spec((tm, H), lambda i, v: (i, 0), buffers=1),   # x rows
                _spec((H, H), lambda i, v: (0, 0), buffers=1),    # dense weight
                _spec((1, H), lambda i, v: (0, 0), buffers=1),    # dense bias
                # Streamed operand: multi-buffered over the vocab axis (default 2, sweep 3).
                _spec((tv, H), lambda i, v: (v, 0), buffers=we_buffers),
                _spec((tm, 1), lambda i, v: (i, 0), buffers=1),   # shift labels
                _spec((tm, 1), lambda i, v: (i, 0), buffers=1),   # active mask
            ],
            out_specs=pl.BlockSpec((1, 8, 128), lambda i, v: (i, 0, 0)),
            scratch_shapes=[
                pltpu.VMEM((tm, H), jnp.bfloat16),   # hidden = tanh(dense(x))
                pltpu.VMEM((tm, 1), jnp.float32),    # running max (m)
                pltpu.VMEM((tm, 1), jnp.float32),    # running sum-exp (l)
                pltpu.VMEM((tm, 1), jnp.float32),    # picked (label) logit
            ]),
        compiler_params=pltpu.CompilerParams(
            dimension_semantics=("parallel", "arbitrary"),
            vmem_limit_bytes=vmem_limit),
        cost_estimate=pl.CostEstimate(
            flops=2 * n_pad * H * (H + v_pad),
            transcendentals=n_pad * (v_pad + H),
            # We is re-streamed from HBM once per M-tile -> num_m factor (perf review).
            bytes_accessed=(2 * num_m * v_pad * H            # We stream (bf16)
                            + 2 * n_pad * H                  # x rows (bf16)
                            + 2 * num_m * H * H              # dense weight
                            + 8 * n_pad                      # labels + active masks
                            + 4 * num_m * 8 * 128)),         # partial-sum outputs
    )(x_p, wd_p, bd_p, we_p, lab_p, act_p)

    sums = jnp.sum(parts[:, 0, :], axis=0)
    return sums[0], sums[1], sums[2]


# ---------------------------------------------------------------------------
# Plain-JAX glue: external encoder / decoder submodules (constructor args)
# ---------------------------------------------------------------------------

def layer_norm(x, g, b, eps=1e-5):
    mu = jnp.mean(x, axis=-1, keepdims=True)
    var = jnp.mean((x - mu) ** 2, axis=-1, keepdims=True)
    return (x - mu) * jax.lax.rsqrt(var + eps) * g + b


def embeddings(ids, p):
    # RoBERTa-style embeddings: word + position, LayerNorm.
    T = ids.shape[1]
    x = p['We'][ids] + p['Wp'][:T][None, :, :]
    return layer_norm(x, p['emb_ln_g'], p['emb_ln_b'])


def _mha(q, kv, prm, nh, attn_mask=None, key_padding_mask=None):
    # q: (Tq, B, H), kv: (Tk, B, H)
    Tq, B, H = q.shape
    dh = H // nh
    scale = 1.0 / jnp.sqrt(jnp.float32(dh))
    qh = q @ prm['Wq'].T + prm['bq']
    kh = kv @ prm['Wk'].T + prm['bk']
    vh = kv @ prm['Wv'].T + prm['bv']

    def split(x):
        return x.reshape(x.shape[0], B, nh, dh).transpose(1, 2, 0, 3)   # (B, nh, T, dh)

    qh, kh, vh = split(qh), split(kh), split(vh)
    scores = jnp.einsum('bhqd,bhkd->bhqk', qh, kh) * scale
    if attn_mask is not None:
        scores = scores + attn_mask[None, None, :, :]
    if key_padding_mask is not None:                          # True = padded key
        scores = jnp.where(key_padding_mask[:, None, None, :], -1e9, scores)
    probs = jax.nn.softmax(scores, axis=-1)
    ctx = jnp.einsum('bhqk,bhkd->bhqd', probs, vh)
    ctx = ctx.transpose(2, 0, 1, 3).reshape(Tq, B, H)
    return ctx @ prm['Wo'].T + prm['bo']


def decoder_layer(tgt, memory, tgt_mask, memory_key_padding_mask, p, nh):
    # Post-norm nn.TransformerDecoderLayer (relu FFN) — external decoder submodule.
    x = tgt
    sa = _mha(x, x, p['self_attn'], nh, attn_mask=tgt_mask)
    x = layer_norm(x + sa, p['ln1_g'], p['ln1_b'])
    ca = _mha(x, memory, p['cross_attn'], nh, key_padding_mask=memory_key_padding_mask)
    x = layer_norm(x + ca, p['ln2_g'], p['ln2_b'])
    ff = jax.nn.relu(x @ p['ffn_W1'].T + p['ffn_b1']) @ p['ffn_W2'].T + p['ffn_b2']
    x = layer_norm(x + ff, p['ln3_g'], p['ln3_b'])
    return x


# ---------------------------------------------------------------------------
# Pure-JAX reference for the fused head (same bf16 matmul numerics)
# ---------------------------------------------------------------------------

def _head_reference(x, dense_w, dense_b, we, labels, active):
    xb = x.astype(jnp.bfloat16)
    h = jnp.tanh(jax.lax.dot_general(xb, dense_w.astype(jnp.bfloat16),
                                     (((1,), (1,)), ((), ())),
                                     preferred_element_type=jnp.float32)
                 + dense_b[None, :])
    logits = jax.lax.dot_general(h.astype(jnp.bfloat16), we.astype(jnp.bfloat16),
                                 (((1,), (1,)), ((), ())),
                                 preferred_element_type=jnp.float32)
    logp = jax.nn.log_softmax(logits, axis=-1)
    safe = jnp.maximum(labels, 0)
    nll = -jnp.take_along_axis(logp, safe[:, None], axis=-1)[:, 0]
    active_b = active.astype(bool)
    valid = active_b & (labels != -1)
    nll_sum = jnp.sum(jnp.where(valid, nll, 0.0))
    valid_cnt = jnp.sum(valid.astype(jnp.float32))
    active_cnt = jnp.sum(active_b.astype(jnp.float32))
    return nll_sum, valid_cnt, active_cnt


# ---------------------------------------------------------------------------
# Seq2Seq.forward (training branch, LT='ce')
# ---------------------------------------------------------------------------

def seq2seq_forward(p, source_ids, source_mask, target_ids, target_mask,
                    nh=4, use_pallas=True, block_m=None, block_v=None):
    B, S = source_ids.shape
    T = target_ids.shape[1]
    H = p['We'].shape[1]
    V = p['We'].shape[0]

    # ----- encoder (external submodule; glue) -----
    # TODO(synk): the full pretrained RoBERTa encoder stack is an external constructor arg;
    # it is represented here by its (tied) embedding layer only.
    enc = embeddings(source_ids, p)                           # (B, S, H)
    encoder_output = jnp.transpose(enc, (1, 0, 2))            # (S, B, H)

    # ----- decoder (external submodule; glue) -----
    attn_mask = -10000.0 * (1.0 - jnp.tril(jnp.ones((T, T), jnp.float32)))
    tgt_emb = jnp.transpose(embeddings(target_ids, p), (1, 0, 2))      # (T, B, H)
    mem_pad = (1 - source_mask).astype(bool)                           # (B, S)
    out = decoder_layer(tgt_emb, encoder_output, attn_mask, mem_pad, p, nh)   # (T, B, H)

    # ----- Seq2Seq head (fused Pallas hot path, tokens-major, no (N,H) transpose) -----
    # Loss only depends on token rows t = 0 .. T-2 ("shift"), i.e. the first (T-1)*B rows of
    # the tokens-major flat layout.  Labels / active masks are permuted to match (cheap).
    N = (T - 1) * B
    out_flat = out.reshape(T * B, H)[:N]                      # (N, H), row = t*B + b
    shift_labels = target_ids[:, 1:].T.reshape(-1)            # (N,)  label[t*B+b] = ids[b, t+1]
    active = (target_mask[:, 1:] != 0).T.reshape(-1)          # (N,)

    if use_pallas:
        we_head = p.get('We_head')
        if we_head is None:
            we_head = p['We']          # fallback: wrapper will cast/pad in-graph
        dense_w = p.get('dense_Wb', p['dense_W'])
        nll_sum, valid_cnt, active_cnt = fused_head_ce(
            out_flat, dense_w, p['dense_b'], we_head, shift_labels, active,
            v_total=V, block_m=block_m, block_v=block_v)
    else:
        nll_sum, valid_cnt, active_cnt = _head_reference(
            out_flat, p['dense_W'], p['dense_b'], p['We'], shift_labels, active)

    loss = nll_sum / jnp.maximum(valid_cnt, 1.0)
    # torch returns (loss, loss * active_loss.sum(), active_loss.sum())
    return loss, loss * active_cnt, active_cnt.astype(jnp.int32)


# ---------------------------------------------------------------------------
# Deterministic parameter construction + run
# ---------------------------------------------------------------------------

def make_params(key, V, H, FF, P):
    ks = jax.random.split(key, 24)
    n = lambda k, s: 0.02 * jax.random.normal(k, s, jnp.float32)
    attn = lambda k4: {'Wq': n(k4[0], (H, H)), 'bq': jnp.zeros((H,), jnp.float32),
                       'Wk': n(k4[1], (H, H)), 'bk': jnp.zeros((H,), jnp.float32),
                       'Wv': n(k4[2], (H, H)), 'bv': jnp.zeros((H,), jnp.float32),
                       'Wo': n(k4[3], (H, H)), 'bo': jnp.zeros((H,), jnp.float32)}
    params = {
        'We': n(ks[0], (V, H)),           # word embeddings == tied lm_head weight
        'Wp': n(ks[1], (P, H)),
        'emb_ln_g': jnp.ones((H,), jnp.float32), 'emb_ln_b': jnp.zeros((H,), jnp.float32),
        'self_attn': attn(ks[2:6]),
        'cross_attn': attn(ks[6:10]),
        'ln1_g': jnp.ones((H,), jnp.float32), 'ln1_b': jnp.zeros((H,), jnp.float32),
        'ln2_g': jnp.ones((H,), jnp.float32), 'ln2_b': jnp.zeros((H,), jnp.float32),
        'ln3_g': jnp.ones((H,), jnp.float32), 'ln3_b': jnp.zeros((H,), jnp.float32),
        'ffn_W1': n(ks[10], (FF, H)), 'ffn_b1': jnp.zeros((FF,), jnp.float32),
        'ffn_W2': n(ks[11], (H, FF)), 'ffn_b2': jnp.zeros((H,), jnp.float32),
        'dense_W': n(ks[12], (H, H)), 'dense_b': jnp.zeros((H,), jnp.float32),
    }
    # One-time bf16 / padded copies for the fused Pallas head (perf review: hoist the
    # per-call cast+pad of the full (V, H) embedding out of the forward graph).
    params['We_head'] = prepare_tied_head_weight(params['We'], multiple=2048)
    params['dense_Wb'] = params['dense_W'].astype(jnp.bfloat16)
    return params


if __name__ == "__main__":
    # Small test shapes (lane-aligned H, multi-tile M and V to exercise the online reduction
    # and the padded-vocab masking: We_head is pre-padded 512 -> 2048 rows).
    B, S, T, H, V, FF, P, NH = 2, 8, 8, 128, 512, 256, 64, 4
    BLOCK_M, BLOCK_V = 8, 128          # N=(T-1)*B=14 -> 2 M-tiles; padded V=2048 -> 16 V-tiles

    root = jax.random.PRNGKey(0)
    kp, k1, k2 = jax.random.split(root, 3)
    params = make_params(kp, V, H, FF, P)

    source_ids = jax.random.randint(k1, (B, S), 0, V, dtype=jnp.int32)
    target_ids = jax.random.randint(k2, (B, T), 0, V, dtype=jnp.int32)
    source_mask = jnp.array([[1, 1, 1, 1, 1, 1, 1, 0],
                             [1, 1, 1, 1, 1, 1, 1, 1]], dtype=jnp.int32)
    target_mask = jnp.array([[1, 1, 1, 1, 1, 1, 0, 0],
                             [1, 1, 1, 1, 1, 1, 1, 1]], dtype=jnp.int32)

    # Pure-JAX reference (same bf16 matmul numerics).
    loss_ref, scaled_ref, n_ref = seq2seq_forward(
        params, source_ids, source_mask, target_ids, target_mask, nh=NH, use_pallas=False)

    # 1) Explicit small-tile path (exercises multi-tile M and V grids).
    fwd = jax.jit(lambda p, a, b, c, d: seq2seq_forward(
        p, a, b, c, d, nh=NH, use_pallas=True, block_m=BLOCK_M, block_v=BLOCK_V))
    loss, scaled_loss, n_active = fwd(params, source_ids, source_mask, target_ids, target_mask)
    jax.block_until_ready((loss, scaled_loss, n_active))
    np.testing.assert_allclose(np.asarray(loss), np.asarray(loss_ref), rtol=1.5e-3, atol=1.5e-3)
    np.testing.assert_allclose(np.asarray(scaled_loss), np.asarray(scaled_ref), rtol=1.5e-3, atol=1.5e-3)
    assert int(n_active) == int(n_ref)

    # 2) Auto (per-generation) tile-config path — what real CodeBERT-scale calls use.
    fwd_auto = jax.jit(lambda p, a, b, c, d: seq2seq_forward(
        p, a, b, c, d, nh=NH, use_pallas=True, block_m=None, block_v=None))
    loss_a, scaled_a, n_a = fwd_auto(params, source_ids, source_mask, target_ids, target_mask)
    jax.block_until_ready((loss_a, scaled_a, n_a))
    np.testing.assert_allclose(np.asarray(loss_a), np.asarray(loss_ref), rtol=1.5e-3, atol=1.5e-3)
    np.testing.assert_allclose(np.asarray(scaled_a), np.asarray(scaled_ref), rtol=1.5e-3, atol=1.5e-3)
    assert int(n_a) == int(n_ref)

    print("KERNEL_OK")
</pallas_src>

<mosaic_0001>
module attributes {stable_mosaic.version = 11 : i64} {
  func.func @_fused_head_ce_kernel(%arg0: i32, %arg1: i32, %arg2: memref<8x128xbf16, #tpu.memory_space<vmem>>, %arg3: memref<128x128xbf16, #tpu.memory_space<vmem>>, %arg4: memref<1x128xf32, #tpu.memory_space<vmem>>, %arg5: memref<128x128xbf16, #tpu.memory_space<vmem>>, %arg6: memref<8x1xi32, #tpu.memory_space<vmem>>, %arg7: memref<8x1xi32, #tpu.memory_space<vmem>>, %arg8: memref<1x8x128xf32, #tpu.memory_space<vmem>>, %arg9: memref<8x128xbf16, #tpu.memory_space<vmem>>, %arg10: memref<8x1xf32, #tpu.memory_space<vmem>>, %arg11: memref<8x1xf32, #tpu.memory_space<vmem>>, %arg12: memref<8x1xf32, #tpu.memory_space<vmem>>) attributes {dimension_semantics = [#tpu.dimension_semantics<parallel>, #tpu.dimension_semantics<arbitrary>], iteration_bounds = array<i64: 2, 16>, scalar_prefetch = 0 : i64, scratch_operands = 4 : i64, tpu.core_type = #tpu.core_type<tc>, window_params = [{pipeline_mode = #tpu.pipeline_mode<synchronous>, transform_indices = @transform_0, window_bounds = array<i64: 8, 128>}, {pipeline_mode = #tpu.pipeline_mode<synchronous>, transform_indices = @transform_1, window_bounds = array<i64: 128, 128>}, {pipeline_mode = #tpu.pipeline_mode<synchronous>, transform_indices = @transform_2, window_bounds = array<i64: 1, 128>}, {pipeline_mode = #tpu.pipeline_mode<double_buffered>, transform_indices = @transform_3, window_bounds = array<i64: 128, 128>}, {pipeline_mode = #tpu.pipeline_mode<synchronous>, transform_indices = @transform_4, window_bounds = array<i64: 8, 1>}, {pipeline_mode = #tpu.pipeline_mode<synchronous>, transform_indices = @transform_5, window_bounds = array<i64: 8, 1>}, {transform_indices = @transform_6, window_bounds = array<i64: 1, 8, 128>}]} {
    %c0_i32 = arith.constant 0 : i32
    %0 = arith.cmpi eq, %arg1, %c0_i32 : i32
    %1 = arith.extui %0 : i1 to i32
    %c0_i32_0 = arith.constant 0 : i32
    %2 = arith.cmpi ne, %1, %c0_i32_0 : i32
    scf.if %2 {
      %c0_24 = arith.constant 0 : index
      %c0_25 = arith.constant 0 : index
      %44 = vector.load %arg2[%c0_24, %c0_25] : memref<8x128xbf16, #tpu.memory_space<vmem>>, vector<8x128xbf16>
      %c0_26 = arith.constant 0 : index
      %c0_27 = arith.constant 0 : index
      %45 = vector.load %arg3[%c0_26, %c0_27] : memref<128x128xbf16, #tpu.memory_space<vmem>>, vector<128x128xbf16>
      %cst_28 = arith.constant dense<0.000000e+00> : vector<8x128xf32>
      %46 = tpu.matmul %44, %45, %cst_28 {dimension_numbers = #tpu.dot_dimension_numbers<[1], [1], [0], [0], [0, 0, 1, 0], [], []>} : vector<8x128xbf16>, vector<128x128xbf16>, vector<8x128xf32> -> vector<8x128xf32>
      %c0_29 = arith.constant 0 : index
      %c0_30 = arith.constant 0 : index
      %47 = vector.load %arg4[%c0_29, %c0_30] : memref<1x128xf32, #tpu.memory_space<vmem>>, vector<1x128xf32>
      %48 = vector.broadcast %47 : vector<1x128xf32> to vector<8x128xf32>
      %49 = arith.addf %46, %48 : vector<8x128xf32>
      %50 = math.tanh %49 : vector<8x128xf32>
      %51 = arith.truncf %50 : vector<8x128xf32> to vector<8x128xbf16>
      %c0_31 = arith.constant 0 : index
      %c0_32 = arith.constant 0 : index
      %52 = vector.load %arg9[%c0_31, %c0_32] : memref<8x128xbf16, #tpu.memory_space<vmem>>, vector<8x128xbf16>
      tpu.vector_store %arg9[%c0_31, %c0_32], %51 {strides = array<i32>} : memref<8x128xbf16, #tpu.memory_space<vmem>>, vector<8x128xbf16>,
      %cst_33 = arith.constant -1.000000e+30 : f32
      %53 = vector.broadcast %cst_33 : f32 to vector<8x1xf32>
      %c0_34 = arith.constant 0 : index
      %c0_35 = arith.constant 0 : index
      %54 = vector.load %arg10[%c0_34, %c0_35] : memref<8x1xf32, #tpu.memory_space<vmem>>, vector<8x1xf32>
      tpu.vector_store %arg10[%c0_34, %c0_35], %53 {strides = array<i32>} : memref<8x1xf32, #tpu.memory_space<vmem>>, vector<8x1xf32>,
      %cst_36 = arith.constant 0.000000e+00 : f32
      %55 = vector.broadcast %cst_36 : f32 to vector<8x1xf32>
      %c0_37 = arith.constant 0 : index
      %c0_38 = arith.constant 0 : index
      %56 = vector.load %arg11[%c0_37, %c0_38] : memref<8x1xf32, #tpu.memory_space<vmem>>, vector<8x1xf32>
      tpu.vector_store %arg11[%c0_37, %c0_38], %55 {strides = array<i32>} : memref<8x1xf32, #tpu.memory_space<vmem>>, vector<8x1xf32>,
      %cst_39 = arith.constant 0.000000e+00 : f32
      %57 = vector.broadcast %cst_39 : f32 to vector<8x1xf32>
      %c0_40 = arith.constant 0 : index
      %c0_41 = arith.constant 0 : index
      %58 = vector.load %arg12[%c0_40, %c0_41] : memref<8x1xf32, #tpu.memory_space<vmem>>, vector<8x1xf32>
      tpu.vector_store %arg12[%c0_40, %c0_41], %57 {strides = array<i32>} : memref<8x1xf32, #tpu.memory_space<vmem>>, vector<8x1xf32>,
    } else {
    }
    %c0 = arith.constant 0 : index
    %c0_1 = arith.constant 0 : index
    %3 = vector.load %arg9[%c0, %c0_1] : memref<8x128xbf16, #tpu.memory_space<vmem>>, vector<8x128xbf16>
    %c0_2 = arith.constant 0 : index
    %c0_3 = arith.constant 0 : index
    %4 = vector.load %arg5[%c0_2, %c0_3] : memref<128x128xbf16, #tpu.memory_space<vmem>>, vector<128x128xbf16>
    %cst = arith.constant dense<0.000000e+00> : vector<8x128xf32>
    %5 = tpu.matmul %3, %4, %cst {dimension_numbers = #tpu.dot_dimension_numbers<[1], [1], [0], [0], [0, 0, 1, 0], [], []>} : vector<8x128xbf16>, vector<128x128xbf16>, vector<8x128xf32> -> vector<8x128xf32>
    %6 = tpu.iota {dimensions = array<i32: 1>} : vector<8x128xi32>
    %c128_i32 = arith.constant 128 : i32
    %7 = arith.muli %arg1, %c128_i32 : i32
    %c512_i32 = arith.constant 512 : i32
    %8 = arith.subi %c512_i32, %7 : i32
    %9 = vector.broadcast %8 : i32 to vector<8x128xi32>
    %10 = arith.cmpi slt, %6, %9 : vector<8x128xi32>
    %cst_4 = arith.constant -1.000000e+30 : f32
    %11 = vector.broadcast %cst_4 : f32 to vector<8x128xf32>
    %12 = arith.select %10, %5, %11 : vector<8x128xi1>, vector<8x128xf32>
    %c0_5 = arith.constant 0 : index
    %c0_6 = arith.constant 0 : index
    %13 = vector.load %arg6[%c0_5, %c0_6] : memref<8x1xi32, #tpu.memory_space<vmem>>, vector<8x1xi32>
    %c0_7 = arith.constant 0 : index
    %c0_8 = arith.constant 0 : index
    %14 = vector.load %arg12[%c0_7, %c0_8] : memref<8x1xf32, #tpu.memory_space<vmem>>, vector<8x1xf32>
    %15 = vector.broadcast %7 : i32 to vector<8x1xi32>
    %16 = arith.subi %13, %15 : vector<8x1xi32>
    %17 = vector.broadcast %16 : vector<8x1xi32> to vector<8x128xi32>
    %18 = arith.cmpi eq, %6, %17 : vector<8x128xi32>
    %cst_9 = arith.constant 0.000000e+00 : f32
    %19 = vector.broadcast %cst_9 : f32 to vector<8x128xf32>
    %20 = arith.select %18, %12, %19 : vector<8x128xi1>, vector<8x128xf32>
    %cst_10 = arith.constant dense<0.000000e+00> : vector<8xf32>
    %21 = vector.multi_reduction <add>, %20, %cst_10 [1] : vector<8x128xf32> to vector<8xf32>
    %22 = vector.shape_cast %21 : vector<8xf32> to vector<8x1xf32>
    %23 = arith.addf %14, %22 : vector<8x1xf32>
    %c0_11 = arith.constant 0 : index
    %c0_12 = arith.constant 0 : index
    %24 = vector.load %arg12[%c0_11, %c0_12] : memref<8x1xf32, #tpu.memory_space<vmem>>, vector<8x1xf32>
    tpu.vector_store %arg12[%c0_11, %c0_12], %23 {strides = array<i32>} : memref<8x1xf32, #tpu.memory_space<vmem>>, vector<8x1xf32>,
    %c0_13 = arith.constant 0 : index
    %c0_14 = arith.constant 0 : index
    %25 = vector.load %arg10[%c0_13, %c0_14] : memref<8x1xf32, #tpu.memory_space<vmem>>, vector<8x1xf32>
    %cst_15 = arith.constant dense<0xFF800000> : vector<8xf32>
    %26 = vector.multi_reduction <maximumf>, %12, %cst_15 [1] : vector<8x128xf32> to vector<8xf32>
    %27 = vector.shape_cast %26 : vector<8xf32> to vector<8x1xf32>
    %28 = arith.maximumf %25, %27 : vector<8x1xf32>
    %29 = arith.subf %25, %28 : vector<8x1xf32>
    %30 = math.exp %29 : vector<8x1xf32>
    %c0_16 = arith.constant 0 : index
    %c0_17 = arith.constant 0 : index
    %31 = vector.load %arg11[%c0_16, %c0_17] : memref<8x1xf32, #tpu.memory_space<vmem>>, vector<8x1xf32>
    %32 = arith.mulf %30, %31 : vector<8x1xf32>
    %33 = vector.broadcast %28 : vector<8x1xf32> to vector<8x128xf32>
    %34 = arith.subf %12, %33 : vector<8x128xf32>
    %35 = math.exp %34 : vector<8x128xf32>
    %cst_18 = arith.constant dense<0.000000e+00> : vector<8xf32>
    %36 = vector.multi_reduction <add>, %35, %cst_18 [1] : vector<8x128xf32> to vector<8xf32>
    %37 = vector.shape_cast %36 : vector<8xf32> to vector<8x1xf32>
    %38 = arith.addf %32, %37 : vector<8x1xf32>
    %c0_19 = arith.constant 0 : index
    %c0_20 = arith.constant 0 : index
    %39 = vector.load %arg11[%c0_19, %c0_20] : memref<8x1xf32, #tpu.memory_space<vmem>>, vector<8x1xf32>
    tpu.vector_store %arg11[%c0_19, %c0_20], %38 {strides = array<i32>} : memref<8x1xf32, #tpu.memory_space<vmem>>, vector<8x1xf32>,
    %c0_21 = arith.constant 0 : index
    %c0_22 = arith.constant 0 : index
    %40 = vector.load %arg10[%c0_21, %c0_22] : memref<8x1xf32, #tpu.memory_space<vmem>>, vector<8x1xf32>
    tpu.vector_store %arg10[%c0_21, %c0_22], %28 {strides = array<i32>} : memref<8x1xf32, #tpu.memory_space<vmem>>, vector<8x1xf32>,
    %c15_i32 = arith.constant 15 : i32
    %41 = arith.cmpi eq, %arg1, %c15_i32 : i32
    %42 = arith.extui %41 : i1 to i32
    %c0_i32_23 = arith.constant 0 : i32
    %43 = arith.cmpi ne, %42, %c0_i32_23 : i32
    scf.if %43 {
      %c0_24 = arith.constant 0 : index
      %c0_25 = arith.constant 0 : index
      %44 = vector.load %arg10[%c0_24, %c0_25] : memref<8x1xf32, #tpu.memory_space<vmem>>, vector<8x1xf32>
      %c0_26 = arith.constant 0 : index
      %c0_27 = arith.constant 0 : index
      %45 = vector.load %arg11[%c0_26, %c0_27] : memref<8x1xf32, #tpu.memory_space<vmem>>, vector<8x1xf32>
      %46 = math.log %45 : vector<8x1xf32>
      %47 = arith.addf %44, %46 : vector<8x1xf32>
      %c0_28 = arith.constant 0 : index
      %c0_29 = arith.constant 0 : index
      %48 = vector.load %arg12[%c0_28, %c0_29] : memref<8x1xf32, #tpu.memory_space<vmem>>, vector<8x1xf32>
      %49 = arith.subf %47, %48 : vector<8x1xf32>
      %c0_30 = arith.constant 0 : index
      %c0_31 = arith.constant 0 : index
      %50 = vector.load %arg7[%c0_30, %c0_31] : memref<8x1xi32, #tpu.memory_space<vmem>>, vector<8x1xi32>
      %c0_i32_32 = arith.constant 0 : i32
      %51 = vector.broadcast %c0_i32_32 : i32 to vector<8x1xi32>
      %52 = arith.cmpi ne, %50, %51 : vector<8x1xi32>
      %c0_33 = arith.constant 0 : index
      %c0_34 = arith.constant 0 : index
      %53 = vector.load %arg6[%c0_33, %c0_34] : memref<8x1xi32, #tpu.memory_space<vmem>>, vector<8x1xi32>
      %c-1_i32 = arith.constant -1 : i32
      %54 = vector.broadcast %c-1_i32 : i32 to vector<8x1xi32>
      %55 = arith.cmpi ne, %53, %54 : vector<8x1xi32>
      %56 = arith.andi %52, %55 : vector<8x1xi1>
      %cst_35 = arith.constant 0.000000e+00 : f32
      %57 = vector.broadcast %cst_35 : f32 to vector<8x1xf32>
      %58 = arith.select %56, %49, %57 : vector<8x1xi1>, vector<8x1xf32>
      %59 = vector.shape_cast %58 : vector<8x1xf32> to vector<1x8x1xf32>
      %cst_36 = arith.constant dense<0.000000e+00> : vector<1xf32>
      %60 = vector.multi_reduction <add>, %59, %cst_36 [1, 2] : vector<1x8x1xf32> to vector<1xf32>
      %61 = vector.shape_cast %60 : vector<1xf32> to vector<1x1x1xf32>
      %62 = vector.extract %61[0, 0, 0] : f32 from vector<1x1x1xf32>
      %63 = arith.extui %56 : vector<8x1xi1> to vector<8x1xi32>
      %64 = arith.sitofp %63 : vector<8x1xi32> to vector<8x1xf32>
      %65 = vector.shape_cast %64 : vector<8x1xf32> to vector<1x8x1xf32>
      %cst_37 = arith.constant dense<0.000000e+00> : vector<1xf32>
      %66 = vector.multi_reduction <add>, %65, %cst_37 [1, 2] : vector<1x8x1xf32> to vector<1xf32>
      %67 = vector.shape_cast %66 : vector<1xf32> to vector<1x1x1xf32>
      %68 = vector.extract %67[0, 0, 0] : f32 from vector<1x1x1xf32>
      %69 = arith.extui %52 : vector<8x1xi1> to vector<8x1xi32>
      %70 = arith.sitofp %69 : vector<8x1xi32> to vector<8x1xf32>
      %71 = vector.shape_cast %70 : vector<8x1xf32> to vector<1x8x1xf32>
      %cst_38 = arith.constant dense<0.000000e+00> : vector<1xf32>
      %72 = vector.multi_reduction <add>, %71, %cst_38 [1, 2] : vector<1x8x1xf32> to vector<1xf32>
      %73 = vector.shape_cast %72 : vector<1xf32> to vector<1x1x1xf32>
      %74 = vector.extract %73[0, 0, 0] : f32 from vector<1x1x1xf32>
      %75 = tpu.iota {dimensions = array<i32: 2>} : vector<1x8x128xi32>
      %c0_i32_39 = arith.constant 0 : i32
      %76 = vector.broadcast %c0_i32_39 : i32 to vector<1x8x128xi32>
      %77 = arith.cmpi eq, %75, %76 : vector<1x8x128xi32>
      %c1_i32 = arith.constant 1 : i32
      %78 = vector.broadcast %c1_i32 : i32 to vector<1x8x128xi32>
      %79 = arith.cmpi eq, %75, %78 : vector<1x8x128xi32>
      %c2_i32 = arith.constant 2 : i32
      %80 = vector.broadcast %c2_i32 : i32 to vector<1x8x128xi32>
      %81 = arith.cmpi eq, %75, %80 : vector<1x8x128xi32>
      %cst_40 = arith.constant 0.000000e+00 : f32
      %82 = vector.broadcast %74 : f32 to vector<1x8x128xf32>
      %83 = vector.broadcast %cst_40 : f32 to vector<1x8x128xf32>
      %84 = arith.select %81, %82, %83 : vector<1x8x128xi1>, vector<1x8x128xf32>
      %85 = vector.broadcast %68 : f32 to vector<1x8x128xf32>
      %86 = arith.select %79, %85, %84 : vector<1x8x128xi1>, vector<1x8x128xf32>
      %87 = vector.broadcast %62 : f32 to vector<1x8x128xf32>
      %88 = arith.select %77, %87, %86 : vector<1x8x128xi1>, vector<1x8x128xf32>
      %c0_41 = arith.constant 0 : index
      %c0_42 = arith.constant 0 : index
      %c0_43 = arith.constant 0 : index
      %89 = vector.load %arg8[%c0_41, %c0_42, %c0_43] : memref<1x8x128xf32, #tpu.memory_space<vmem>>, vector<1x8x128xf32>
      tpu.vector_store %arg8[%c0_41, %c0_42, %c0_43], %88 {strides = array<i32>} : memref<1x8x128xf32, #tpu.memory_space<vmem>>, vector<1x8x128xf32>,
    } else {
    }
    return
  }
  func.func @transform_0(%arg0: i32, %arg1: i32) -> (i32, i32) {
    %c0_i32 = arith.constant 0 : i32
    %c0_i32_0 = arith.constant 0 : i32
    return %arg0, %c0_i32 : i32, i32
  }
  func.func @transform_1(%arg0: i32, %arg1: i32) -> (i32, i32) {
    %c0_i32 = arith.constant 0 : i32
    %c0_i32_0 = arith.constant 0 : i32
    %c0_i32_1 = arith.constant 0 : i32
    return %c0_i32, %c0_i32_0 : i32, i32
  }
  func.func @transform_2(%arg0: i32, %arg1: i32) -> (i32, i32) {
    %c0_i32 = arith.constant 0 : i32
    %c0_i32_0 = arith.constant 0 : i32
    %c0_i32_1 = arith.constant 0 : i32
    return %c0_i32, %c0_i32_0 : i32, i32
  }
  func.func @transform_3(%arg0: i32, %arg1: i32) -> (i32, i32) {
    %c0_i32 = arith.constant 0 : i32
    %c0_i32_0 = arith.constant 0 : i32
    return %arg1, %c0_i32 : i32, i32
  }
  func.func @transform_4(%arg0: i32, %arg1: i32) -> (i32, i32) {
    %c0_i32 = arith.constant 0 : i32
    %c0_i32_0 = arith.constant 0 : i32
    return %arg0, %c0_i32 : i32, i32
  }
  func.func @transform_5(%arg0: i32, %arg1: i32) -> (i32, i32) {
    %c0_i32 = arith.constant 0 : i32
    %c0_i32_0 = arith.constant 0 : i32
    return %arg0, %c0_i32 : i32, i32
  }
  func.func @transform_6(%arg0: i32, %arg1: i32) -> (i32, i32, i32) {
    %c0_i32 = arith.constant 0 : i32
    %c0_i32_0 = arith.constant 0 : i32
    %c0_i32_1 = arith.constant 0 : i32
    return %arg0, %c0_i32, %c0_i32_0 : i32, i32, i32
  }
}

</mosaic_0001>

<llo_original>
// kernel: _lambda_.1
$region0: #{_lambda_.1}
  #allocation0 [shape = 'u32[]', space=smem, size = 0x4, offset = 0x4, fixed_abs, tag = 'smem constant byte address 0x4 - core index']
  #allocation1 [shape = 'u32[144,128]{1,0:T(1,128)}', space=vmem, size = 0x12000, scoped, tag = 'internal scratch']
  #allocation2 [shape = 'bf16[8,128]{1,0:T(8,128)(2,1)}', space=vmem, size = 0x800, scoped, tag = 'scratch operand']
  #allocation3 [shape = 'f32[8,1]{1,0:T(8,128)}', space=vmem, size = 0x1000, scoped, tag = 'scratch operand']
  #allocation4 [shape = 'f32[8,1]{1,0:T(8,128)}', space=vmem, size = 0x1000, scoped, tag = 'scratch operand']
  #allocation5 [shape = 'f32[8,1]{1,0:T(8,128)}', space=vmem, size = 0x1000, scoped, tag = 'scratch operand']
  %s0 = inlined_call_operand.vmem [shape: bf16[16,128], index: 0, kind: input, shape index: {}]
  %s1 = inlined_call_operand.vmem [shape: bf16[128,128], index: 1, kind: input, shape index: {}]
  %s2 = inlined_call_operand.vmem [shape: f32[1,128], index: 2, kind: input, shape index: {}]
  %s3 = inlined_call_operand.vmem [shape: bf16[2048,128], index: 3, kind: input, shape index: {}]
  %s4 = inlined_call_operand.vmem [shape: s32[16,1], index: 4, kind: input, shape index: {}]
  %s5 = inlined_call_operand.vmem [shape: s32[16,1], index: 5, kind: input, shape index: {}]
  %s6 = inlined_call_operand.vmem [shape: f32[2,8,128], index: 6, kind: output, shape index: {}]
  %s7 = sld [smem:[#allocation0]]
  $region65: #{_lambda_.1} parent=0
    _
  %s9 = ssub.s32 1, %s7
  %s10 = scalar_select 0, %s9, %s7
  loop: start=0, step=1, limit=34
  $region2: #{_lambda_.1} parent=0 // loop_pre_header
    _
  $region3: #{_lambda_.1} parent=0 // loop_header
    %s12 = sphi 0, %s16
    %p13 = scmp.ge.s32.totalorder %s12, 34
    %s19 = sphi 0, %s31
    %s20 = sphi 0, %s27
    %s21 = sphi 0, %s19
    %s22 = sphi 0, %s20
    %s23 = sphi 0, %s21
    %s24 = sphi 0, %s22
    %s34 = sphi 0, %s36
    %s37 = sphi 0, %s34
    %s38 = sphi 0, %s37
    %s54 = sphi 0, %s38
    %s58 = sphi 0, %s58
    %s60 = sphi 0, %s58
    %s61 = sphi 0, %s60
    %s75 = sphi 0, %s61
    %s79 = sphi 0, %s79
    %s81 = sphi 0, %s79
    %s82 = sphi 0, %s81
    %s96 = sphi 0, %s82
    %s102 = sphi 0, %s104
    %s105 = sphi 0, %s102
    %s106 = sphi 0, %s105
    %s122 = sphi 0, %s106
    %s128 = sphi 0, %s130
    %s131 = sphi 0, %s128
    %s132 = sphi 0, %s131
    %s148 = sphi 0, %s132
    %s154 = sphi 0, %s156
    %s157 = sphi 0, %s154
    %s158 = sphi 0, %s157
    %s174 = sphi 0, %s158
    %s180 = sphi 0, %s182
    %s183 = sphi 0, %s180
    %s184 = sphi 0, %s183
    %s200 = sphi 0, %s184
  $region4: #{_lambda_.1} parent=0 // loop_header_branch
    %15 = sbr.rel (%p13) target = $region8
  $region5: #{_lambda_.1} parent=0 // loop_body
    %s17 = ssub.s32 %s12, 1
    %s18 = ssub.s32 %s12, 2
    %s25 = sadd.s32 1, %s20
    %p26 = scmp.ge.s32.totalorder %s25, 16
    %s27 = scalar_select %p26, 0, %s25
    %s28 = sadd.s32 1, %s19
    %s29 = scalar_select %p26, %s28, %s19
    %p30 = scmp.ge.s32.totalorder %s29, 2
    %s31 = scalar_select %p30, 0, %s29
    %s32 = ssub.s32 %s19, %s31
    %p33 = scmp.eq.s32.totalorder %s32, 0
    %s35 = sadd.s32 %s34, 1
    %s36 = scalar_select %p33, %s34, %s35
    %p39 = pneg %p33
    %p40 = scmp.eq.s32.totalorder %s12, 31
    %p41 = por %p39, %p40
    %p42 = scmp.ne.s32.totalorder %s34, %s37
    %p43 = scmp.eq.s32.totalorder %s12, 0
    %p44 = por %p42, %p43
    %p45 = scmp.ne.s32.totalorder %s34, %s37
    %p46 = scmp.eq.s32.totalorder %s17, 31
    %p47 = por %p45, %p46
    %p48 = scmp.ne.s32.totalorder %s37, %s38
    %p49 = scmp.eq.s32.totalorder %s17, 0
    %p50 = por %p48, %p49
    %p51 = scmp.ne.s32.totalorder %s37, %s38
    %p52 = scmp.eq.s32.totalorder %s18, 31
    %p53 = por %p51, %p52
    %p55 = scmp.ne.s32.totalorder %s38, %s54
    %p56 = scmp.eq.s32.totalorder %s18, 0
    %p57 = por %p55, %p56
    %s59 = sadd.s32 %s58, 1
    %p62 = scmp.eq.s32.totalorder %s12, 31
    %p63 = scmp.ne.s32.totalorder %s58, %s60
    %p64 = scmp.eq.s32.totalorder %s12, 0
    %p65 = por %p63, %p64
    %p66 = scmp.ne.s32.totalorder %s58, %s60
    %p67 = scmp.eq.s32.totalorder %s17, 31
    %p68 = por %p66, %p67
    %p69 = scmp.ne.s32.totalorder %s60, %s61
    %p70 = scmp.eq.s32.totalorder %s17, 0
    %p71 = por %p69, %p70
    %p72 = scmp.ne.s32.totalorder %s60, %s61
    %p73 = scmp.eq.s32.totalorder %s18, 31
    %p74 = por %p72, %p73
    %p76 = scmp.ne.s32.totalorder %s61, %s75
    %p77 = scmp.eq.s32.totalorder %s18, 0
    %p78 = por %p76, %p77
    %s80 = sadd.s32 %s79, 1
    %p83 = scmp.eq.s32.totalorder %s12, 31
    %p84 = scmp.ne.s32.totalorder %s79, %s81
    %p85 = scmp.eq.s32.totalorder %s12, 0
    %p86 = por %p84, %p85
    %p87 = scmp.ne.s32.totalorder %s79, %s81
    %p88 = scmp.eq.s32.totalorder %s17, 31
    %p89 = por %p87, %p88
    %p90 = scmp.ne.s32.totalorder %s81, %s82
    %p91 = scmp.eq.s32.totalorder %s17, 0
    %p92 = por %p90, %p91
    %p93 = scmp.ne.s32.totalorder %s81, %s82
    %p94 = scmp.eq.s32.totalorder %s18, 31
    %p95 = por %p93, %p94
    %p97 = scmp.ne.s32.totalorder %s82, %s96
    %p98 = scmp.eq.s32.totalorder %s18, 0
    %p99 = por %p97, %p98
    %s100 = ssub.s32 %s20, %s27
    %p101 = scmp.eq.s32.totalorder %s100, 0
    %s103 = sadd.s32 %s102, 1
    %s104 = scalar_select %p101, %s102, %s103
    %p107 = pneg %p101
    %p108 = scmp.eq.s32.totalorder %s12, 31
    %p109 = por %p107, %p108
    %p110 = scmp.ne.s32.totalorder %s102, %s105
    %p111 = scmp.eq.s32.totalorder %s12, 0
    %p112 = por %p110, %p111
    %p113 = scmp.ne.s32.totalorder %s102, %s105
    %p114 = scmp.eq.s32.totalorder %s17, 31
    %p115 = por %p113, %p114
    %p116 = scmp.ne.s32.totalorder %s105, %s106
    %p117 = scmp.eq.s32.totalorder %s17, 0
    %p118 = por %p116, %p117
    %p119 = scmp.ne.s32.totalorder %s105, %s106
    %p120 = scmp.eq.s32.totalorder %s18, 31
    %p121 = por %p119, %p120
    %p123 = scmp.ne.s32.totalorder %s106, %s122
    %p124 = scmp.eq.s32.totalorder %s18, 0
    %p125 = por %p123, %p124
    %s126 = ssub.s32 %s19, %s31
    %p127 = scmp.eq.s32.totalorder %s126, 0
    %s129 = sadd.s32 %s128, 1
    %s130 = scalar_select %p127, %s128, %s129
    %p133 = pneg %p127
    %p134 = scmp.eq.s32.totalorder %s12, 31
    %p135 = por %p133, %p134
    %p136 = scmp.ne.s32.totalorder %s128, %s131
    %p137 = scmp.eq.s32.totalorder %s12, 0
    %p138 = por %p136, %p137
    %p139 = scmp.ne.s32.totalorder %s128, %s131
    %p140 = scmp.eq.s32.totalorder %s17, 31
    %p141 = por %p139, %p140
    %p142 = scmp.ne.s32.totalorder %s131, %s132
    %p143 = scmp.eq.s32.totalorder %s17, 0
    %p144 = por %p142, %p143
    %p145 = scmp.ne.s32.totalorder %s131, %s132
    %p146 = scmp.eq.s32.totalorder %s18, 31
    %p147 = por %p145, %p146
    %p149 = scmp.ne.s32.totalorder %s132, %s148
    %p150 = scmp.eq.s32.totalorder %s18, 0
    %p151 = por %p149, %p150
    %s152 = ssub.s32 %s19, %s31
    %p153 = scmp.eq.s32.totalorder %s152, 0
    %s155 = sadd.s32 %s154, 1
    %s156 = scalar_select %p153, %s154, %s155
    %p159 = pneg %p153
    %p160 = scmp.eq.s32.totalorder %s12, 31
    %p161 = por %p159, %p160
    %p162 = scmp.ne.s32.totalorder %s154, %s157
    %p163 = scmp.eq.s32.totalorder %s12, 0
    %p164 = por %p162, %p163
    %p165 = scmp.ne.s32.totalorder %s154, %s157
    %p166 = scmp.eq.s32.totalorder %s17, 31
    %p167 = por %p165, %p166
    %p168 = scmp.ne.s32.totalorder %s157, %s158
    %p169 = scmp.eq.s32.totalorder %s17, 0
    %p170 = por %p168, %p169
    %p171 = scmp.ne.s32.totalorder %s157, %s158
    %p172 = scmp.eq.s32.totalorder %s18, 31
    %p173 = por %p171, %p172
    %p175 = scmp.ne.s32.totalorder %s158, %s174
    %p176 = scmp.eq.s32.totalorder %s18, 0
    %p177 = por %p175, %p176
    %s178 = ssub.s32 %s19, %s31
    %p179 = scmp.eq.s32.totalorder %s178, 0
    %s181 = sadd.s32 %s180, 1
    %s182 = scalar_select %p179, %s180, %s181
    %p185 = pneg %p179
    %p186 = scmp.eq.s32.totalorder %s12, 31
    %p187 = por %p185, %p186
    %p188 = scmp.ne.s32.totalorder %s180, %s183
    %p189 = scmp.eq.s32.totalorder %s12, 0
    %p190 = por %p188, %p189
    %p191 = scmp.ne.s32.totalorder %s180, %s183
    %p192 = scmp.eq.s32.totalorder %s17, 31
    %p193 = por %p191, %p192
    %p194 = scmp.ne.s32.totalorder %s183, %s184
    %p195 = scmp.eq.s32.totalorder %s17, 0
    %p196 = por %p194, %p195
    %p197 = scmp.ne.s32.totalorder %s183, %s184
    %p198 = scmp.eq.s32.totalorder %s18, 31
    %p199 = por %p197, %p198
    %p201 = scmp.ne.s32.totalorder %s184, %s200
    %p202 = scmp.eq.s32.totalorder %s18, 0
    %p203 = por %p201, %p202
    %p204 = scmp.le.s32.totalorder 1, %s12
    %p205 = scmp.lt.s32.totalorder %s12, 33
    %p206 = pnand %p204, %p205
    %p207 = pneg %p206
    // Predicated region
    $region9: #{_lambda_.1} parent=5 // pred_check
      _
    $region10: #{_lambda_.1} parent=5 // pred_check_branch
      %209 = sbr.rel (%p206) target = $region12
    $region11: #{_lambda_.1} parent=5 // pred_region
      %s210 = ssub.s32 %s12, 1
      // Predicated region
      $region13: #{_lambda_.1} parent=11 // pred_check
        %p211 = pneg %p50
      $region14: #{_lambda_.1} parent=11 // pred_check_branch
        %213 = sbr.rel (%p211) target = $region16
      $region15: #{_lambda_.1} parent=11 // pred_region
        %p214 = scmp.lt.s32.totalorder %s21, 1
        %s215 = scalar_select %p214, %s21, 1
        %s216 = smul.addr %s215, 4
        %s217 = scalar_lea.vmem %s0, %s216
      $region16: #{_lambda_.1} parent=11 // pred_fallthru
        _
      // Predicated region
      $region17: #{_lambda_.1} parent=11 // pred_check
        %p218 = pneg %p71
      $region18: #{_lambda_.1} parent=11 // pred_check_branch
        %220 = sbr.rel (%p218) target = $region20
      $region19: #{_lambda_.1} parent=11 // pred_region
        _
      $region20: #{_lambda_.1} parent=11 // pred_fallthru
        _
      // Predicated region
      $region21: #{_lambda_.1} parent=11 // pred_check
        %p221 = pneg %p92
      $region22: #{_lambda_.1} parent=11 // pred_check_branch
        %223 = sbr.rel (%p221) target = $region24
      $region23: #{_lambda_.1} parent=11 // pred_region
        _
      $region24: #{_lambda_.1} parent=11 // pred_fallthru
        _
      // Predicated region
      $region25: #{_lambda_.1} parent=11 // pred_check
        %p224 = pneg %p144
      $region26: #{_lambda_.1} parent=11 // pred_check_branch
        %226 = sbr.rel (%p224) target = $region28
      $region27: #{_lambda_.1} parent=11 // pred_region
        %p227 = scmp.lt.s32.totalorder %s21, 1
        %s228 = scalar_select %p227, %s21, 1
        %s229 = smul.addr %s228, 8
        %s230 = scalar_lea.vmem %s4, %s229
      $region28: #{_lambda_.1} parent=11 // pred_fallthru
        _
      // Predicated region
      $region29: #{_lambda_.1} parent=11 // pred_check
        %p231 = pneg %p170
      $region30: #{_lambda_.1} parent=11 // pred_check_branch
        %233 = sbr.rel (%p231) target = $region32
      $region31: #{_lambda_.1} parent=11 // pred_region
        %p234 = scmp.lt.s32.totalorder %s21, 1
        %s235 = scalar_select %p234, %s21, 1
        %s236 = smul.addr %s235, 8
        %s237 = scalar_lea.vmem %s5, %s236
      $region32: #{_lambda_.1} parent=11 // pred_fallthru
        _
    $region12: #{_lambda_.1} parent=5 // pred_fallthru
      _
    %p238 = scmp.lt.s32.totalorder %s12, 32
    // Predicated region
    $region33: #{_lambda_.1} parent=5 // pred_check
      %p239 = pneg %p238
    $region34: #{_lambda_.1} parent=5 // pred_check_branch
      %241 = sbr.rel (%p239) target = $region36
    $region35: #{_lambda_.1} parent=5 // pred_region
      // Predicated region
      $region37: #{_lambda_.1} parent=35 // pred_check
        %p242 = pneg %p112
      $region38: #{_lambda_.1} parent=35 // pred_check_branch
        %244 = sbr.rel (%p242) target = $region40
      $region39: #{_lambda_.1} parent=35 // pred_region
        %s245 = smul.u32 16, %s20
        %p246 = scmp.lt.s32.totalorder %s245, 255
        %s247 = scalar_select %p246, %s245, 255
        %s248 = smul.addr %s247, 4
        %s249 = scalar_lea.vmem %s3, %s248
        %s250 = smul.u32 16, %s20
      $region40: #{_lambda_.1} parent=35 // pred_fallthru
        _
    $region36: #{_lambda_.1} parent=5 // pred_fallthru
      _
    %p251 = scmp.le.s32.totalorder 1, %s12
    %p252 = scmp.lt.s32.totalorder %s12, 33
    %p253 = pnand %p251, %p252
    %p254 = pneg %p253
    // Predicated region
    $region41: #{_lambda_.1} parent=5 // pred_check
      _
    $region42: #{_lambda_.1} parent=5 // pred_check_branch
      %256 = sbr.rel (%p253) target = $region44
    $region43: #{_lambda_.1} parent=5 // pred_region
      %s257 = ssub.s32 %s12, 1
      %p258 = scmp.lt.s32.totalorder %s21, 1
      %s259 = scalar_select %p258, %s21, 1
      %s260 = smul.addr %s259, 4
      %s261 = scalar_lea.vmem %s0, %s260
      %p262 = pneg %p50
      %p263 = pneg %p47
      %p264 = pneg %p71
      %p265 = pneg %p68
      %p266 = pneg %p92
      %p267 = pneg %p89
      %s268 = smul.u32 16, %s22
      %p269 = scmp.lt.s32.totalorder %s268, 255
      %s270 = scalar_select %p269, %s268, 255
      %s271 = smul.addr %s270, 4
      %s272 = scalar_lea.vmem %s3, %s271
      %p273 = pneg %p118
      %p274 = pneg %p115
      %p275 = scmp.lt.s32.totalorder %s21, 1
      %s276 = scalar_select %p275, %s21, 1
      %s277 = smul.addr %s276, 8
      %s278 = scalar_lea.vmem %s4, %s277
      %p279 = pneg %p144
      %p280 = pneg %p141
      %p281 = scmp.lt.s32.totalorder %s21, 1
      %s282 = scalar_select %p281, %s21, 1
      %s283 = smul.addr %s282, 8
      %s284 = scalar_lea.vmem %s5, %s283
      %p285 = pneg %p170
      %p286 = pneg %p167
      %p287 = pneg %p196
      %p288 = pneg %p193
      %p289 = scmp.lt.s32.totalorder %s21, 1
      %s290 = scalar_select %p289, %s21, 1
      %s291 = smul.addr %s290, 8
      %s292 = scalar_lea.vmem %s6, %s291
      %p293 = scmp.lt.s32.totalorder %s21, 1
      %s294 = scalar_select %p293, %s21, 1
      %s295 = smul.addr %s294, 4
      %s296 = scalar_lea.vmem %s0, %s295
      %s297 = smul.u32 16, %s22
      %p298 = scmp.lt.s32.totalorder %s297, 255
      %s299 = scalar_select %p298, %s297, 255
      %s300 = smul.addr %s299, 4
      %s301 = scalar_lea.vmem %s3, %s300
      %s302 = smul.u32 16, %s22
      %p303 = scmp.lt.s32.totalorder %s21, 1
      %s304 = scalar_select %p303, %s21, 1
      %s305 = smul.addr %s304, 8
      %s306 = scalar_lea.vmem %s4, %s305
      %p307 = scmp.lt.s32.totalorder %s21, 1
      %s308 = scalar_select %p307, %s21, 1
      %s309 = smul.addr %s308, 8
      %s310 = scalar_lea.vmem %s5, %s309
      %p311 = scmp.lt.s32.totalorder %s21, 1
      %s312 = scalar_select %p311, %s21, 1
      %s313 = smul.addr %s312, 8
      %s314 = scalar_lea.vmem %s6, %s313
      %p316 = scmp.eq.s32.totalorder %s22, 0
      // Predicated region
      $region45: #{_lambda_.1} parent=43 // pred_check
        %p317 = pneg %p316
      $region46: #{_lambda_.1} parent=43 // pred_check_branch
        %319 = sbr.rel (%p317) target = $region48
      $region47: #{_lambda_.1} parent=43 // pred_region
        %v320 = vld [vmem:[%s296] sm:$0xf]
        %v321 = vld [vmem:[%s1] sm:$0xf]
        %v322 = vld [vmem:[%s1 + $0x4] sm:$0xf]
        %v323 = vld [vmem:[%s1 + $0x8] sm:$0xf]
        %v324 = vld [vmem:[%s1 + $0xc] sm:$0xf]
        %v325 = vld [vmem:[%s1 + $0x10] sm:$0xf]
        %v326 = vld [vmem:[%s1 + $0x14] sm:$0xf]
        %v327 = vld [vmem:[%s1 + $0x18] sm:$0xf]
        %v328 = vld [vmem:[%s1 + $0x1c] sm:$0xf]
        %v329 = vld [vmem:[%s1 + $0x20] sm:$0xf]
        %v330 = vld [vmem:[%s1 + $0x24] sm:$0xf]
        %v331 = vld [vmem:[%s1 + $0x28] sm:$0xf]
        %v332 = vld [vmem:[%s1 + $0x2c] sm:$0xf]
        %v333 = vld [vmem:[%s1 + $0x30] sm:$0xf]
        %v334 = vld [vmem:[%s1 + $0x34] sm:$0xf]
        %v335 = vld [vmem:[%s1 + $0x38] sm:$0xf]
        %v336 = vld [vmem:[%s1 + $0x3c] sm:$0xf]
        %v337 = vld [vmem:[%s2] sm:$0x1]
        %v339 = vlaneseq
        %v340 = vshrl.u32 %v339, 7
        %v341 = vsub.s32 0, %v340
        %v342 = vrot.slane %v337, %v341
        %v360 = vunpack.c.l.b16 %v321
        %v361 = vunpack.c.l.b16 %v322
        %v362 = vunpack.c.l.b16 %v323
        %v363 = vunpack.c.l.b16 %v324
        %v364 = vunpack.c.l.b16 %v325
        %v365 = vunpack.c.l.b16 %v326
        %v366 = vunpack.c.l.b16 %v327
        %v367 = vunpack.c.l.b16 %v328
        %v368 = vunpack.c.l.b16 %v329
        %v369 = vunpack.c.l.b16 %v330
        %v370 = vunpack.c.l.b16 %v331
        %v371 = vunpack.c.l.b16 %v332
        %v372 = vunpack.c.l.b16 %v333
        %v373 = vunpack.c.l.b16 %v334
        %v374 = vunpack.c.l.b16 %v335
        %v375 = vunpack.c.l.b16 %v336
        %v376 = vpack.c.b16 %v361, %v360
        %v377 = vpack.c.b16 %v363, %v362
        %v378 = vpack.c.b16 %v365, %v364
        %v379 = vpack.c.b16 %v367, %v366
        %v380 = vpack.c.b16 %v369, %v368
        %v381 = vpack.c.b16 %v371, %v370
        %v382 = vpack.c.b16 %v373, %v372
        %v383 = vpack.c.b16 %v375, %v374
        %392 = vmatprep.subr.bf16.mxu0 0
        %393 = vmatpush1.bf16.xpose.msra.mxu0 %v376
        %394 = vmatprep.subr.bf16.mxu0 0
        %395 = vmatpush1.bf16.xpose.msra.mxu0 %v377
        %396 = vmatprep.subr.bf16.mxu0 0
        %397 = vmatpush1.bf16.xpose.msra.mxu0 %v378
        %398 = vmatprep.subr.bf16.mxu0 0
        %399 = vmatpush1.bf16.xpose.msra.mxu0 %v379
        %400 = vmatprep.subr.bf16.mxu0 0
        %401 = vmatpush1.bf16.xpose.msra.mxu0 %v380
        %402 = vmatprep.subr.bf16.mxu0 0
        %403 = vmatpush1.bf16.xpose.msra.mxu0 %v381
        %404 = vmatprep.subr.bf16.mxu0 0
        %405 = vmatpush1.bf16.xpose.msra.mxu0 %v382
        %406 = vmatprep.subr.bf16.mxu0 0
        %407 = vmatpush1.bf16.xpose.msra.mxu0 %v383
        %408 = vmatprep.subr.bf16.mxu0 0
        %409 = vmatpush1.bf16.xpose.msra.mxu0 0
        %410 = vmatprep.subr.bf16.mxu0 0
        %411 = vmatpush1.bf16.xpose.msra.mxu0 0
        %412 = vmatprep.subr.bf16.mxu0 0
        %413 = vmatpush1.bf16.xpose.msra.mxu0 0
        %414 = vmatprep.subr.bf16.mxu0 0
        %415 = vmatpush1.bf16.xpose.msra.mxu0 0
        %416 = vmatprep.subr.bf16.mxu0 0
        %417 = vmatpush1.bf16.xpose.msra.mxu0 0
        %418 = vmatprep.subr.bf16.mxu0 0
        %419 = vmatpush1.bf16.xpose.msra.mxu0 0
        %420 = vmatprep.subr.bf16.mxu0 0
        %421 = vmatpush1.bf16.xpose.msra.mxu0 0
        %422 = vmatprep.subr.bf16.mxu0 0
        %423 = vmatpush1.bf16.xpose.msra.mxu0 0
        %424 = vmatprep.mubr.bf16.mxu0 0
        %425 = vmatmul.mubr.bf16.gmra.mrb[0].mxu0 %v320
        %v426 = vpop.f32.mrb[0].mxu0
        %v427 = vadd.f32 %v342, %v426
        %v428 = vpop.f32.mrb[0].mxu0
        %v429 = vpop.f32.mrb[0].mxu0
        %v430 = vpop.f32.mrb[0].mxu0
        %431 = vdwg.mxu0
        %v432 = vtanh.pop %v427
        %v433 = vpack.c.bf16 %v432, %v432
        %434 = vst [vmem:[#allocation2] sm:$0xf] %v433
        %vm435 = vcmask 7168
        %436 = vst.msk [vmem:[#allocation3] sm:$0xff] %vm435, -1e+30
        %437 = vst.msk [vmem:[#allocation4] sm:$0xff] %vm435, 0.0
        %438 = vst.msk [vmem:[#allocation5] sm:$0xff] %vm435, 0.0
      $region48: #{_lambda_.1} parent=43 // pred_fallthru
        _
      %v439 = vld [vmem:[#allocation2] sm:$0xf]
      %v440 = vld [vmem:[%s301] sm:$0xf]
      %v441 = vld [vmem:[%s301 + $0x4] sm:$0xf]
      %v442 = vld [vmem:[%s301 + $0x8] sm:$0xf]
      %v443 = vld [vmem:[%s301 + $0xc] sm:$0xf]
      %v444 = vld [vmem:[%s301 + $0x10] sm:$0xf]
      %v445 = vld [vmem:[%s301 + $0x14] sm:$0xf]
      %v446 = vld [vmem:[%s301 + $0x18] sm:$0xf]
      %v447 = vld [vmem:[%s301 + $0x1c] sm:$0xf]
      %v448 = vld [vmem:[%s301 + $0x20] sm:$0xf]
      %v449 = vld [vmem:[%s301 + $0x24] sm:$0xf]
      %v450 = vld [vmem:[%s301 + $0x28] sm:$0xf]
      %v451 = vld [vmem:[%s301 + $0x2c] sm:$0xf]
      %v452 = vld [vmem:[%s301 + $0x30] sm:$0xf]
      %v453 = vld [vmem:[%s301 + $0x34] sm:$0xf]
      %v454 = vld [vmem:[%s301 + $0x38] sm:$0xf]
      %v455 = vld [vmem:[%s301 + $0x3c] sm:$0xf]
      %v472 = vunpack.c.l.b16 %v440
      %v473 = vunpack.c.l.b16 %v441
      %v474 = vunpack.c.l.b16 %v442
      %v475 = vunpack.c.l.b16 %v443
      %v476 = vunpack.c.l.b16 %v444
      %v477 = vunpack.c.l.b16 %v445
      %v478 = vunpack.c.l.b16 %v446
      %v479 = vunpack.c.l.b16 %v447
      %v480 = vunpack.c.l.b16 %v448
      %v481 = vunpack.c.l.b16 %v449
      %v482 = vunpack.c.l.b16 %v450
      %v483 = vunpack.c.l.b16 %v451
      %v484 = vunpack.c.l.b16 %v452
      %v485 = vunpack.c.l.b16 %v453
      %v486 = vunpack.c.l.b16 %v454
      %v487 = vunpack.c.l.b16 %v455
      %v488 = vpack.c.b16 %v473, %v472
      %v489 = vpack.c.b16 %v475, %v474
      %v490 = vpack.c.b16 %v477, %v476
      %v491 = vpack.c.b16 %v479, %v478
      %v492 = vpack.c.b16 %v481, %v480
      %v493 = vpack.c.b16 %v483, %v482
      %v494 = vpack.c.b16 %v485, %v484
      %v495 = vpack.c.b16 %v487, %v486
      %504 = vmatprep.subr.bf16.mxu0 0
      %505 = vmatpush1.bf16.xpose.msra.mxu0 %v488
      %506 = vmatprep.subr.bf16.mxu0 0
      %507 = vmatpush1.bf16.xpose.msra.mxu0 %v489
      %508 = vmatprep.subr.bf16.mxu0 0
      %509 = vmatpush1.bf16.xpose.msra.mxu0 %v490
      %510 = vmatprep.subr.bf16.mxu0 0
      %511 = vmatpush1.bf16.xpose.msra.mxu0 %v491
      %512 = vmatprep.subr.bf16.mxu0 0
      %513 = vmatpush1.bf16.xpose.msra.mxu0 %v492
      %514 = vmatprep.subr.bf16.mxu0 0
      %515 = vmatpush1.bf16.xpose.msra.mxu0 %v493
      %516 = vmatprep.subr.bf16.mxu0 0
      %517 = vmatpush1.bf16.xpose.msra.mxu0 %v494
      %518 = vmatprep.subr.bf16.mxu0 0
      %519 = vmatpush1.bf16.xpose.msra.mxu0 %v495
      %520 = vmatprep.subr.bf16.mxu0 0
      %521 = vmatpush1.bf16.xpose.msra.mxu0 0
      %522 = vmatprep.subr.bf16.mxu0 0
      %523 = vmatpush1.bf16.xpose.msra.mxu0 0
      %524 = vmatprep.subr.bf16.mxu0 0
      %525 = vmatpush1.bf16.xpose.msra.mxu0 0
      %526 = vmatprep.subr.bf16.mxu0 0
      %527 = vmatpush1.bf16.xpose.msra.mxu0 0
      %528 = vmatprep.subr.bf16.mxu0 0
      %529 = vmatpush1.bf16.xpose.msra.mxu0 0
      %530 = vmatprep.subr.bf16.mxu0 0
      %531 = vmatpush1.bf16.xpose.msra.mxu0 0
      %532 = vmatprep.subr.bf16.mxu0 0
      %533 = vmatpush1.bf16.xpose.msra.mxu0 0
      %534 = vmatprep.subr.bf16.mxu0 0
      %535 = vmatpush1.bf16.xpose.msra.mxu0 0
      %536 = vmatprep.mubr.bf16.mxu0 0
      %537 = vmatmul.mubr.bf16.gmra.mrb[0].mxu0 %v439
      %v538 = vpop.f32.mrb[0].mxu0
      %v539 = vadd.f32 0.0, %v538
      %v540 = vpop.f32.mrb[0].mxu0
      %v541 = vpop.f32.mrb[0].mxu0
      %v542 = vpop.f32.mrb[0].mxu0
      %543 = vdwg.mxu0
      %v544 = vlaneseq
      %v545 = vand.u32 %v544, 127
      %s546 = smul.u32 %s22, 128
      %s547 = ssub.s32 512, %s546
      %v548 = vstv %s547
      %vm549 = vcmp.lt.s32.totalorder %v545, %v548
      %v550 = vsel %vm549, %v539, -1e+30
      %v551 = vld [vmem:[%s306] sm:$0xff]
      %v552 = vld [vmem:[#allocation5] sm:$0xff]
      %v553 = vstv %s546
      %v554 = vsub.s32 %v551, %v553
      %555 = vset.pattern.permute.xlu0 0
      %556 = vperm.xlu0 %555, %v554
      %v557 = vpop.permute.xlu0 %556
      %vm558 = vcmp.eq.s32.totalorder %v545, %v557
      %v559 = vsel %vm558, %v550, 0.0
      %560 = vadd.xlane.f32.xlu0 %v559
      %v561 = vpop.xlane.xlu0 %560
      %v562 = vadd.f32 %v552, %v561
      %vm563 = vcmask 7168
      %564 = vst.msk [vmem:[#allocation5] sm:$0xff] %vm563, %v562
      %v565 = vld [vmem:[#allocation3] sm:$0xff]
      %566 = vmax.xlane.f32.xlu0 %v550
      %v567 = vpop.xlane.xlu0 %566
      %v568 = vmax.f32 %v565, %v567
      %v569 = vsub.f32 %v565, %v568
      %v570 = vmul.f32 %v569, 1.442695
      %v571 = vpow.pop %v570
      %v572 = vld [vmem:[#allocation4] sm:$0xff]
      %v573 = vmul.f32 %v571, %v572
      %575 = vset.pattern.permute.xlu0 0
      %576 = vperm.xlu0 %575, %v568
      %v577 = vpop.permute.xlu0 %576
      %v579 = vsub.f32 %v550, %v577
      %v580 = vmul.f32 %v579, 1.442695
      %v581 = vpow.pop %v580
      %582 = vadd.xlane.f32.xlu0 %v581
      %v583 = vpop.xlane.xlu0 %582
      %v584 = vadd.f32 %v573, %v583
      %585 = vst.msk [vmem:[#allocation4] sm:$0xff] %vm563, %v584
      %586 = vst.msk [vmem:[#allocation3] sm:$0xff] %vm563, %v568
      %p587 = scmp.eq.s32.totalorder %s22, 15
      // Predicated region
      $region49: #{_lambda_.1} parent=43 // pred_check
        %p588 = pneg %p587
      $region50: #{_lambda_.1} parent=43 // pred_check_branch
        %590 = sbr.rel (%p588) target = $region52
      $region51: #{_lambda_.1} parent=43 // pred_region
        %v591 = vld [vmem:[#allocation3] sm:$0xff]
        %v592 = vld [vmem:[#allocation4] sm:$0xff]
        %v593 = vlog2.pop %v592
        %v594 = vmul.f32 %v593, 0.6931472
        %v595 = vadd.f32 %v591, %v594
        %v596 = vld [vmem:[#allocation5] sm:$0xff]
        %v597 = vsub.f32 %v595, %v596
        %v598 = vld [vmem:[%s310] sm:$0xff]
        %vm599 = vcmp.ne.s32.totalorder %v598, 0
        %v600 = vld [vmem:[%s306] sm:$0xff]
        %vm601 = vcmp.ne.s32.totalorder %v600, 4294967295
        %vm602 = vmand %vm599, %vm601
        %v603 = vsel %vm602, %v597, 0.0
        %v604 = vsel %vm563, %v603, 0.0
        %605 = vadd.xlane.f32.xlu0 %v604
        %v606 = vpop.xlane.xlu0 %605
        %v607 = vrot.slane %v606, 4
        %v608 = vadd.f32 %v606, %v607
        %v609 = vrot.slane %v608, 2
        %v610 = vadd.f32 %v608, %v609
        %v611 = vrot.slane %v610, 1
        %v612 = vadd.f32 %v610, %v611
        %s613 = vtos %v612
        %v614 = vsel %vm602, 1, 0
        %v615 = vcvt.s32.f32 %v614
        %v616 = vsel %vm563, %v615, 0.0
        %617 = vadd.xlane.f32.xlu0 %v616
        %v618 = vpop.xlane.xlu0 %617
        %v619 = vrot.slane %v618, 4
        %v620 = vadd.f32 %v618, %v619
        %v621 = vrot.slane %v620, 2
        %v622 = vadd.f32 %v620, %v621
        %v623 = vrot.slane %v622, 1
        %v624 = vadd.f32 %v622, %v623
        %s625 = vtos %v624
        %v626 = vsel %vm599, 1, 0
        %v627 = vcvt.s32.f32 %v626
        %v628 = vsel %vm563, %v627, 0.0
        %629 = vadd.xlane.f32.xlu0 %v628
        %v630 = vpop.xlane.xlu0 %629
        %v631 = vrot.slane %v630, 4
        %v632 = vadd.f32 %v630, %v631
        %v633 = vrot.slane %v632, 2
        %v634 = vadd.f32 %v632, %v633
        %v635 = vrot.slane %v634, 1
        %v636 = vadd.f32 %v634, %v635
        %s637 = vtos %v636
        %vm638 = vcmp.eq.s32.totalorder %v545, 0
        %vm639 = vcmp.eq.s32.totalorder %v545, 1
        %vm640 = vcmp.eq.s32.totalorder %v545, 2
        %v641 = vstv %s637
        %v642 = vsel %vm640, %v641, 0.0
        %v643 = vstv %s625
        %v644 = vsel %vm639, %v643, %v642
        %v645 = vstv %s613
        %v646 = vsel %vm638, %v645, %v644
        %647 = vst [vmem:[%s314] sm:$0xff] %v646
      $region52: #{_lambda_.1} parent=43 // pred_fallthru
        _
      %p648 = scmp.lt.s32.totalorder %s21, 1
      %s649 = scalar_select %p648, %s21, 1
      %s650 = smul.addr %s649, 8
      %s651 = scalar_lea.vmem %s6, %s650
      // Predicated region
      $region53: #{_lambda_.1} parent=43 // pred_check
        %p652 = pneg %p193
      $region54: #{_lambda_.1} parent=43 // pred_check_branch
        %654 = sbr.rel (%p652) target = $region56
      $region55: #{_lambda_.1} parent=43 // pred_region
        _
      $region56: #{_lambda_.1} parent=43 // pred_fallthru
        _
    $region44: #{_lambda_.1} parent=5 // pred_fallthru
      _
    %p655 = scmp.le.s32.totalorder 2, %s12
    // Predicated region
    $region57: #{_lambda_.1} parent=5 // pred_check
      %p656 = pneg %p655
    $region58: #{_lambda_.1} parent=5 // pred_check_branch
      %658 = sbr.rel (%p656) target = $region60
    $region59: #{_lambda_.1} parent=5 // pred_region
      %s659 = ssub.s32 %s12, 2
      // Predicated region
      $region61: #{_lambda_.1} parent=59 // pred_check
        %p660 = pneg %p199
      $region62: #{_lambda_.1} parent=59 // pred_check_branch
        %662 = sbr.rel (%p660) target = $region64
      $region63: #{_lambda_.1} parent=59 // pred_region
        %p663 = scmp.lt.s32.totalorder %s23, 1
        %s664 = scalar_select %p663, %s23, 1
        %s665 = smul.addr %s664, 8
        %s666 = scalar_lea.vmem %s6, %s665
      $region64: #{_lambda_.1} parent=59 // pred_fallthru
        _
    $region60: #{_lambda_.1} parent=5 // pred_fallthru
      _
  $region6: #{_lambda_.1} parent=0 // loop_footer
    %s16 = sadd.s32 1, %s12
  $region7: #{_lambda_.1} parent=0 // loop_footer_branch
    %11 = sbr.rel target = $region3
  $region8: #{_lambda_.1} parent=0 // loop_exit
    _

</llo_original>
